<compile_context>
chip_gen: v5e
topology: v5e:2x2
jax: 0.10.0
libtpu: 0.0.40
codegen_flags: <defaults>
</compile_context>

<pallas_src>
import functools

import jax
import jax.numpy as jnp
from jax.experimental import pallas as pl
from jax.experimental.pallas import tpu as pltpu


# ----------------------------------------------------------------------------
# Kernel: a single fused per-feature affine on a (TB, D) batch tile.
# ----------------------------------------------------------------------------
def _affine_kernel(x_ref, scale_ref, shift_ref, o_ref):
    x = x_ref[...].astype(jnp.float32)                      # (TB, D)
    o_ref[...] = (x * scale_ref[...] + shift_ref[...]).astype(o_ref.dtype)


# ----------------------------------------------------------------------------
# Wrapper-side fold of the K-layer diagonal affine chain (grid-invariant).
# ----------------------------------------------------------------------------
def _fold_affine_chain(logs, bias, inds, reverse):
    """Fold the K layers (applied in `inds` order) into one (D,) scale/shift
    plus the total log|det J| scalar.  Runs once per call as a tiny XLA op."""
    D = logs.shape[1]
    scale = jnp.ones((D,), jnp.float32)
    shift = jnp.zeros((D,), jnp.float32)
    s_tot = jnp.zeros((D,), jnp.float32)
    for k in inds:                                          # static unroll, K small
        s = logs[k].astype(jnp.float32)
        b = bias[k].astype(jnp.float32)
        s_tot = s_tot + s
        if not reverse:
            e = jnp.exp(s)              # compose  x <- x*e + b
            scale = scale * e
            shift = shift * e + b
        else:
            e = jnp.exp(-s)             # compose  x <- (x - b)*e
            scale = scale * e
            shift = (shift - b) * e
    logdet = jnp.sum(s_tot)
    return scale.reshape(1, D), shift.reshape(1, D), logdet


# ----------------------------------------------------------------------------
# Batch-tile picker: byte budget + dtype-aware sublane alignment + >=2 steps.
# ----------------------------------------------------------------------------
def _pick_block_b(B, D, dtype, block_b=None):
    if block_b is not None:
        return block_b
    itemsize = jnp.dtype(dtype).itemsize
    sub = max(8, 32 // itemsize)            # f32 -> 8, bf16 -> 16, int8/fp8 -> 32
    if B <= sub:
        return B                            # single full-height block (== array dim)
    # ~4 MiB per x block (double-buffered in + out ~= 16 MiB, fits all gens
    # including v7x's 32 MiB scoped / 64 MiB physical VMEM).
    budget_rows = (4 * 1024 * 1024) // (max(D, 128) * itemsize)
    tb = max(sub, (budget_rows // sub) * sub)
    # Cap at ceil(B/2) (sublane-aligned) so the grid always has >= 2 steps:
    # keeps the pipeline live and lets ("parallel",) shard across v7x's 2 TCs.
    half = -(-B // 2)
    half = -(-half // sub) * sub
    tb = min(tb, half)
    return tb


# ----------------------------------------------------------------------------
# Public entry point: Pallas equivalent of SequentialFlow.forward.
# ----------------------------------------------------------------------------
def sequential_flow(x, logpx=None, logs=None, bias=None,
                    reverse=False, inds=None, block_b=None, donate_x=False):
    """x: (B, D);  logpx: (B, 1) or None;  logs/bias: (K, D) per-layer params."""
    B, D = x.shape
    K = logs.shape[0]

    # Same index handling as SequentialFlow.forward.
    if inds is None:
        inds = tuple(range(K - 1, -1, -1)) if reverse else tuple(range(K))
    else:
        inds = tuple(int(i) for i in inds)

    # Grid-invariant fold, hoisted out of the kernel.
    scale, shift, logdet = _fold_affine_chain(logs, bias, inds, reverse)

    TB = _pick_block_b(B, D, x.dtype, block_b)
    grid = (pl.cdiv(B, TB),)

    x_spec = pl.BlockSpec((TB, D), lambda i: (i, 0))
    par_spec = pl.BlockSpec((1, D), lambda i: (0, 0))       # params stay resident

    itemsize = jnp.dtype(x.dtype).itemsize
    cost = pl.CostEstimate(
        flops=2 * B * D,
        transcendentals=0,
        bytes_accessed=2 * B * D * itemsize + 2 * D * 4,
    )
    cparams = pltpu.CompilerParams(
        dimension_semantics=("parallel",),                  # batch tiles independent
        vmem_limit_bytes=32 * 1024 * 1024,
    )

    call_kwargs = dict(
        out_shape=jax.ShapeDtypeStruct((B, D), x.dtype),
        grid=grid,
        in_specs=[x_spec, par_spec, par_spec],
        out_specs=x_spec,
        compiler_params=cparams,
        cost_estimate=cost,
    )
    if donate_x:
        call_kwargs["input_output_aliases"] = {0: 0}

    x_out = pl.pallas_call(_affine_kernel, **call_kwargs)(x, scale, shift)

    if logpx is None:
        return x_out

    # log-det update is data-independent: a constant scalar add, done in XLA.
    sign = 1.0 if reverse else -1.0
    lp_out = logpx.astype(jnp.float32) + sign * logdet
    return x_out, lp_out


# ----------------------------------------------------------------------------
# Pure-JAX reference mirroring the strictly sequential PyTorch chain.
# ----------------------------------------------------------------------------
def _reference(x, logpx, logs, bias, reverse=False):
    K = logs.shape[0]
    inds = range(K - 1, -1, -1) if reverse else range(K)
    x = x.astype(jnp.float32)
    lp = logpx.astype(jnp.float32)
    for k in inds:
        s, b = logs[k], bias[k]
        if not reverse:
            x = x * jnp.exp(s)[None, :] + b[None, :]
            lp = lp - jnp.sum(s)
        else:
            x = (x - b[None, :]) * jnp.exp(-s)[None, :]
            lp = lp + jnp.sum(s)
    return x, lp


if __name__ == "__main__":
    B, D, K = 64, 128, 4

    key = jax.random.PRNGKey(0)
    kx, ks, kb = jax.random.split(key, 3)
    x = jax.random.normal(kx, (B, D), jnp.float32)
    logpx = jnp.zeros((B, 1), jnp.float32)
    logs = 0.1 * jax.random.normal(ks, (K, D), jnp.float32)   # per-layer params
    bias = 0.05 * jax.random.normal(kb, (K, D), jnp.float32)

    # Forward pass with logpx (the (x, logpx) branch of SequentialFlow.forward).
    y, lpy = sequential_flow(x, logpx, logs, bias, reverse=False)
    y = jax.block_until_ready(y)
    lpy = jax.block_until_ready(lpy)

    # Reverse pass (inds reversed, inverse layer application).
    xr, lpr = sequential_flow(y, lpy, logs, bias, reverse=True)
    xr = jax.block_until_ready(xr)
    lpr = jax.block_until_ready(lpr)

    # logpx=None branch: returns x only.
    y_only = jax.block_until_ready(
        sequential_flow(x, None, logs, bias, reverse=False))

    # Non-divisible batch: exercises pl.cdiv partial-block handling.
    Bo = 40
    xo = jax.random.normal(kx, (Bo, D), jnp.float32)
    lpo = jnp.zeros((Bo, 1), jnp.float32)
    yo, lpyo = sequential_flow(xo, lpo, logs, bias, reverse=False)
    yo = jax.block_until_ready(yo)
    lpyo = jax.block_until_ready(lpyo)

    # Correctness checks against pure-JAX reference + invertibility.
    y_ref, lp_ref = _reference(x, logpx, logs, bias, reverse=False)
    assert jnp.allclose(y, y_ref, atol=1e-4), "forward x mismatch"
    assert jnp.allclose(lpy, lp_ref, atol=1e-4), "forward logpx mismatch"
    assert jnp.allclose(y_only, y_ref, atol=1e-4), "x-only branch mismatch"
    assert jnp.allclose(xr, x, atol=1e-4), "reverse did not invert forward"
    assert jnp.allclose(lpr, logpx, atol=1e-4), "reverse logpx mismatch"

    yo_ref, lpo_ref = _reference(xo, lpo, logs, bias, reverse=False)
    assert jnp.allclose(yo, yo_ref, atol=1e-4), "partial-block x mismatch"
    assert jnp.allclose(lpyo, lpo_ref, atol=1e-4), "partial-block logpx mismatch"

    print("KERNEL_OK")
</pallas_src>

<mosaic_0001>
module attributes {stable_mosaic.version = 11 : i64} {
  func.func @_affine_kernel(%arg0: i32, %arg1: memref<32x128xf32, #tpu.memory_space<vmem>>, %arg2: memref<1x128xf32, #tpu.memory_space<vmem>>, %arg3: memref<1x128xf32, #tpu.memory_space<vmem>>, %arg4: memref<32x128xf32, #tpu.memory_space<vmem>>) attributes {dimension_semantics = [#tpu.dimension_semantics<parallel>], iteration_bounds = array<i64: 2>, scalar_prefetch = 0 : i64, scratch_operands = 0 : i64, tpu.core_type = #tpu.core_type<tc>, window_params = [{transform_indices = @transform_0, window_bounds = array<i64: 32, 128>}, {pipeline_mode = #tpu.pipeline_mode<synchronous>, transform_indices = @transform_1, window_bounds = array<i64: 1, 128>}, {pipeline_mode = #tpu.pipeline_mode<synchronous>, transform_indices = @transform_2, window_bounds = array<i64: 1, 128>}, {transform_indices = @transform_3, window_bounds = array<i64: 32, 128>}]} {
    %c0 = arith.constant 0 : index
    %c0_0 = arith.constant 0 : index
    %0 = vector.load %arg1[%c0, %c0_0] : memref<32x128xf32, #tpu.memory_space<vmem>>, vector<32x128xf32>
    %c0_1 = arith.constant 0 : index
    %c0_2 = arith.constant 0 : index
    %1 = vector.load %arg2[%c0_1, %c0_2] : memref<1x128xf32, #tpu.memory_space<vmem>>, vector<1x128xf32>
    %2 = vector.broadcast %1 : vector<1x128xf32> to vector<32x128xf32>
    %3 = arith.mulf %0, %2 : vector<32x128xf32>
    %c0_3 = arith.constant 0 : index
    %c0_4 = arith.constant 0 : index
    %4 = vector.load %arg3[%c0_3, %c0_4] : memref<1x128xf32, #tpu.memory_space<vmem>>, vector<1x128xf32>
    %5 = vector.broadcast %4 : vector<1x128xf32> to vector<32x128xf32>
    %6 = arith.addf %3, %5 : vector<32x128xf32>
    %c0_5 = arith.constant 0 : index
    %c0_6 = arith.constant 0 : index
    %7 = vector.load %arg4[%c0_5, %c0_6] : memref<32x128xf32, #tpu.memory_space<vmem>>, vector<32x128xf32>
    tpu.vector_store %arg4[%c0_5, %c0_6], %6 {strides = array<i32>} : memref<32x128xf32, #tpu.memory_space<vmem>>, vector<32x128xf32>,
    return
  }
  func.func @transform_0(%arg0: i32) -> (i32, i32) {
    %c0_i32 = arith.constant 0 : i32
    %c0_i32_0 = arith.constant 0 : i32
    return %arg0, %c0_i32 : i32, i32
  }
  func.func @transform_1(%arg0: i32) -> (i32, i32) {
    %c0_i32 = arith.constant 0 : i32
    %c0_i32_0 = arith.constant 0 : i32
    %c0_i32_1 = arith.constant 0 : i32
    return %c0_i32, %c0_i32_0 : i32, i32
  }
  func.func @transform_2(%arg0: i32) -> (i32, i32) {
    %c0_i32 = arith.constant 0 : i32
    %c0_i32_0 = arith.constant 0 : i32
    %c0_i32_1 = arith.constant 0 : i32
    return %c0_i32, %c0_i32_0 : i32, i32
  }
  func.func @transform_3(%arg0: i32) -> (i32, i32) {
    %c0_i32 = arith.constant 0 : i32
    %c0_i32_0 = arith.constant 0 : i32
    return %arg0, %c0_i32 : i32, i32
  }
}

</mosaic_0001>

<llo_original>
// kernel: tpu_custom_call.1
$region0: #{tpu_custom_call.1}
  #allocation0 [shape = 'u32[]', space=smem, size = 0x4, offset = 0x4, fixed_abs, tag = 'smem constant byte address 0x4 - core index']
  #allocation1 [shape = 'u32[72,128]{1,0:T(1,128)}', space=vmem, size = 0x9000, scoped, tag = 'internal scratch']
  %s0 = inlined_call_operand.hbm [shape: f32[64,128], index: 0, kind: input, shape index: {}]
  %s1 = inlined_call_operand.hbm [shape: f32[1,128], index: 1, kind: input, shape index: {}]
  %s2 = inlined_call_operand.vmem [shape: f32[1,128], index: 2, kind: input, shape index: {}]
  %s3 = inlined_call_operand.hbm [shape: f32[64,128], index: 3, kind: output, shape index: {}]
  %s4 = sld [smem:[#allocation0]]
  $region53: #{tpu_custom_call.1} parent=0
    _
  %s6 = ssub.s32 1, %s4
  %s7 = scalar_select 0, %s6, %s4
  $region1: #{tpu_custom_call.1} parent=0
    #allocation2 [shape = 'u8[32768]{0}', space=vmem, size = 0x8000, scoped, tag = 'input window, operand 0']
    #allocation3 [shape = 's32[2]{0}', space=sflag, size = 0x8, scoped, tag = 'scoped memory for tpu_custom_call.1']
    #allocation4 [shape = 's32[2]{0}', space=sflag, size = 0x8, scoped, tag = 'scoped memory for tpu_custom_call.1']
    #allocation5 [shape = 'u8[512]{0}', space=vmem, size = 0x400, scoped, tag = 'input window, operand 1, single buffered']
    #allocation6 [shape = 's32[1]{0}', space=sflag, size = 0x4, scoped, tag = 'scoped memory for tpu_custom_call.1']
    #allocation7 [shape = 'u8[32768]{0}', space=vmem, size = 0x8000, scoped, tag = 'output window, operand 0']
    %8 = vsyncpa [#allocation3], 0
    %s9 = scalar_lea.sflag [#allocation3], 1
    %10 = vsyncpa %s9, 0
    %11 = vsyncpa [#allocation6], 0
    %12 = vsyncpa [#allocation4], 0
    %s13 = scalar_lea.sflag [#allocation4], 1
    %14 = vsyncpa %s13, 0
    loop: start=0, step=1, limit=4
    $region2: #{tpu_custom_call.1} parent=1 // loop_pre_header
      _
    $region3: #{tpu_custom_call.1} parent=1 // loop_header
      %s16 = sphi 0, %s20
      %p17 = scmp.ge.s32.totalorder %s16, 4
      %s26 = sphi 0, %s28
      %s29 = sphi 0, %s26
      %s30 = sphi 0, %s29
      %s46 = sphi 0, %s30
      %s50 = sphi 0, %s50
      %s52 = sphi 0, %s50
      %s53 = sphi 0, %s52
      %s67 = sphi 0, %s53
      %s71 = sphi 0, %s71
      %s73 = sphi 0, %s71
      %s74 = sphi 0, %s73
      %s88 = sphi 0, %s74
      %s94 = sphi 0, %s96
      %s97 = sphi 0, %s94
      %s98 = sphi 0, %s97
      %s114 = sphi 0, %s98
    $region4: #{tpu_custom_call.1} parent=1 // loop_header_branch
      %19 = sbr.rel (%p17) target = $region8
    $region5: #{tpu_custom_call.1} parent=1 // loop_body
      %s21 = ssub.s32 %s16, 1
      %s22 = ssub.s32 %s16, 2
      %s23 = sadd.s32 %s16, 1
      %s24 = ssub.s32 %s16, %s23
      %p25 = scmp.eq.s32.totalorder %s24, 0
      %s27 = sadd.s32 %s26, 1
      %s28 = scalar_select %p25, %s26, %s27
      %p31 = pneg %p25
      %p32 = scmp.eq.s32.totalorder %s16, 1
      %p33 = por %p31, %p32
      %p34 = scmp.ne.s32.totalorder %s26, %s29
      %p35 = scmp.eq.s32.totalorder %s16, 0
      %p36 = por %p34, %p35
      %p37 = scmp.ne.s32.totalorder %s26, %s29
      %p38 = scmp.eq.s32.totalorder %s21, 1
      %p39 = por %p37, %p38
      %p40 = scmp.ne.s32.totalorder %s29, %s30
      %p41 = scmp.eq.s32.totalorder %s21, 0
      %p42 = por %p40, %p41
      %p43 = scmp.ne.s32.totalorder %s29, %s30
      %p44 = scmp.eq.s32.totalorder %s22, 1
      %p45 = por %p43, %p44
      %p47 = scmp.ne.s32.totalorder %s30, %s46
      %p48 = scmp.eq.s32.totalorder %s22, 0
      %p49 = por %p47, %p48
      %s51 = sadd.s32 %s50, 1
      %p54 = scmp.eq.s32.totalorder %s16, 1
      %p55 = scmp.ne.s32.totalorder %s50, %s52
      %p56 = scmp.eq.s32.totalorder %s16, 0
      %p57 = por %p55, %p56
      %p58 = scmp.ne.s32.totalorder %s50, %s52
      %p59 = scmp.eq.s32.totalorder %s21, 1
      %p60 = por %p58, %p59
      %p61 = scmp.ne.s32.totalorder %s52, %s53
      %p62 = scmp.eq.s32.totalorder %s21, 0
      %p63 = por %p61, %p62
      %p64 = scmp.ne.s32.totalorder %s52, %s53
      %p65 = scmp.eq.s32.totalorder %s22, 1
      %p66 = por %p64, %p65
      %p68 = scmp.ne.s32.totalorder %s53, %s67
      %p69 = scmp.eq.s32.totalorder %s22, 0
      %p70 = por %p68, %p69
      %s72 = sadd.s32 %s71, 1
      %p75 = scmp.eq.s32.totalorder %s16, 1
      %p76 = scmp.ne.s32.totalorder %s71, %s73
      %p77 = scmp.eq.s32.totalorder %s16, 0
      %p78 = por %p76, %p77
      %p79 = scmp.ne.s32.totalorder %s71, %s73
      %p80 = scmp.eq.s32.totalorder %s21, 1
      %p81 = por %p79, %p80
      %p82 = scmp.ne.s32.totalorder %s73, %s74
      %p83 = scmp.eq.s32.totalorder %s21, 0
      %p84 = por %p82, %p83
      %p85 = scmp.ne.s32.totalorder %s73, %s74
      %p86 = scmp.eq.s32.totalorder %s22, 1
      %p87 = por %p85, %p86
      %p89 = scmp.ne.s32.totalorder %s74, %s88
      %p90 = scmp.eq.s32.totalorder %s22, 0
      %p91 = por %p89, %p90
      %s92 = ssub.s32 %s16, %s23
      %p93 = scmp.eq.s32.totalorder %s92, 0
      %s95 = sadd.s32 %s94, 1
      %s96 = scalar_select %p93, %s94, %s95
      %p99 = pneg %p93
      %p100 = scmp.eq.s32.totalorder %s16, 1
      %p101 = por %p99, %p100
      %p102 = scmp.ne.s32.totalorder %s94, %s97
      %p103 = scmp.eq.s32.totalorder %s16, 0
      %p104 = por %p102, %p103
      %p105 = scmp.ne.s32.totalorder %s94, %s97
      %p106 = scmp.eq.s32.totalorder %s21, 1
      %p107 = por %p105, %p106
      %p108 = scmp.ne.s32.totalorder %s97, %s98
      %p109 = scmp.eq.s32.totalorder %s21, 0
      %p110 = por %p108, %p109
      %p111 = scmp.ne.s32.totalorder %s97, %s98
      %p112 = scmp.eq.s32.totalorder %s22, 1
      %p113 = por %p111, %p112
      %p115 = scmp.ne.s32.totalorder %s98, %s114
      %p116 = scmp.eq.s32.totalorder %s22, 0
      %p117 = por %p115, %p116
      %p118 = scmp.le.s32.totalorder 1, %s16
      %p119 = scmp.lt.s32.totalorder %s16, 3
      %p120 = pnand %p118, %p119
      %p121 = pneg %p120
      // Predicated region
      $region9: #{tpu_custom_call.1} parent=5 // pred_check
        _
      $region10: #{tpu_custom_call.1} parent=5 // pred_check_branch
        %123 = sbr.rel (%p120) target = $region12
      $region11: #{tpu_custom_call.1} parent=5 // pred_region
        %s124 = ssub.s32 %s16, 1
        // Predicated region
        $region13: #{tpu_custom_call.1} parent=11 // pred_check
          %p125 = pneg %p63
        $region14: #{tpu_custom_call.1} parent=11 // pred_check_branch
          %127 = sbr.rel (%p125) target = $region16
        $region15: #{tpu_custom_call.1} parent=11 // pred_region
          %129 = vsyncadd [#allocation6], 0
          %s131 = sshll.u32 %s1, 4
          %s132 = int_to_ptr.hbm [resolvable:$true] %s131
          %s133 = sshll.u32 [#allocation5], 4
          %s134 = int_to_ptr.vmem [resolvable:$true] %s133
          %136 = dma.hbm_to_vmem [thread:$0]  %s132, 16, %s134, [#allocation6]
        $region16: #{tpu_custom_call.1} parent=11 // pred_fallthru
          _
        // Predicated region
        $region17: #{tpu_custom_call.1} parent=11 // pred_check
          %p137 = pneg %p84
        $region18: #{tpu_custom_call.1} parent=11 // pred_check_branch
          %139 = sbr.rel (%p137) target = $region20
        $region19: #{tpu_custom_call.1} parent=11 // pred_region
          _
        $region20: #{tpu_custom_call.1} parent=11 // pred_fallthru
          _
      $region12: #{tpu_custom_call.1} parent=5 // pred_fallthru
        _
      %p140 = scmp.lt.s32.totalorder %s16, 2
      // Predicated region
      $region21: #{tpu_custom_call.1} parent=5 // pred_check
        %p141 = pneg %p140
      $region22: #{tpu_custom_call.1} parent=5 // pred_check_branch
        %143 = sbr.rel (%p141) target = $region24
      $region23: #{tpu_custom_call.1} parent=5 // pred_region
        // Predicated region
        $region25: #{tpu_custom_call.1} parent=23 // pred_check
          %p144 = pneg %p36
        $region26: #{tpu_custom_call.1} parent=23 // pred_check_branch
          %146 = sbr.rel (%p144) target = $region28
        $region27: #{tpu_custom_call.1} parent=23 // pred_region
          %s147 = sand.u32 %s26, 1
          %s148 = scalar_lea.sflag [#allocation3], %s147
          %s149 = sand.u32 %s26, 1
          %s150 = smul.addr %s149, 32
          %s151 = scalar_lea.vmem [#allocation2], %s150
          %s152 = smul.u32 4, %s16
          %154 = vsyncadd %s148, 0
          %s155 = smul.addr %s152, 8
          %s156 = scalar_lea.hbm %s0, %s155
          %s157 = sshll.u32 %s156, 4
          %s158 = int_to_ptr.hbm [resolvable:$true] %s157
          %s159 = sshll.u32 %s151, 4
          %s160 = int_to_ptr.vmem [resolvable:$true] %s159
          %165 = dma.hbm_to_vmem [thread:$0]  %s158, 512, %s160, %s148, 128, 128, 8
        $region28: #{tpu_custom_call.1} parent=23 // pred_fallthru
          _
      $region24: #{tpu_custom_call.1} parent=5 // pred_fallthru
        _
      %p166 = scmp.le.s32.totalorder 1, %s16
      %p167 = scmp.lt.s32.totalorder %s16, 3
      %p168 = pnand %p166, %p167
      %p169 = pneg %p168
      // Predicated region
      $region29: #{tpu_custom_call.1} parent=5 // pred_check
        _
      $region30: #{tpu_custom_call.1} parent=5 // pred_check_branch
        %171 = sbr.rel (%p168) target = $region32
      $region31: #{tpu_custom_call.1} parent=5 // pred_region
        %s172 = ssub.s32 %s16, 1
        %s173 = sand.u32 %s29, 1
        %s174 = scalar_lea.sflag [#allocation3], %s173
        %s175 = sand.u32 %s29, 1
        %s176 = smul.addr %s175, 32
        %s177 = scalar_lea.vmem [#allocation2], %s176
        // Predicated region
        $region33: #{tpu_custom_call.1} parent=31 // pred_check
          %p178 = pneg %p42
        $region34: #{tpu_custom_call.1} parent=31 // pred_check_branch
          %180 = sbr.rel (%p178) target = $region36
        $region35: #{tpu_custom_call.1} parent=31 // pred_region
          %182 = dma.done %s174, 512
        $region36: #{tpu_custom_call.1} parent=31 // pred_fallthru
          _
        // Predicated region
        $region37: #{tpu_custom_call.1} parent=31 // pred_check
          %p183 = pneg %p63
        $region38: #{tpu_custom_call.1} parent=31 // pred_check_branch
          %185 = sbr.rel (%p183) target = $region40
        $region39: #{tpu_custom_call.1} parent=31 // pred_region
          %187 = dma.done [#allocation6], 16
        $region40: #{tpu_custom_call.1} parent=31 // pred_fallthru
          _
        %s188 = sand.u32 %s29, 1
        %s189 = scalar_lea.sflag [#allocation3], %s188
        %s190 = sand.u32 %s29, 1
        %s191 = smul.addr %s190, 32
        %s192 = scalar_lea.vmem [#allocation2], %s191
        %p193 = pneg %p42
        %p194 = pneg %p39
        %p195 = pneg %p63
        %p196 = pneg %p60
        %p197 = pneg %p84
        %p198 = pneg %p81
        %p199 = pneg %p110
        %p200 = pneg %p107
        %s201 = sand.u32 %s97, 1
        %s202 = scalar_lea.sflag [#allocation4], %s201
        %s203 = sand.u32 %s97, 1
        %s204 = smul.addr %s203, 32
        %s205 = scalar_lea.vmem [#allocation7], %s204
        %s206 = smul.u32 4, %s21
        %s207 = smul.u32 4, %s21
        %v208 = vld [vmem:[%s177] sm:$0xff]
        %v209 = vld [vmem:[%s177 + $0x8] sm:$0xff]
        %v210 = vld [vmem:[%s177 + $0x10] sm:$0xff]
        %v211 = vld [vmem:[%s177 + $0x18] sm:$0xff]
        %v212 = vld [vmem:[#allocation5] sm:$0x1]
        %v214 = vperm.slane %v212, 0
        %v216 = vmul.f32 %v208, %v214
        %v217 = vmul.f32 %v209, %v214
        %v218 = vmul.f32 %v210, %v214
        %v219 = vmul.f32 %v211, %v214
        %v220 = vld [vmem:[%s2] sm:$0x1]
        %v222 = vperm.slane %v220, 0
        %v224 = vadd.f32 %v216, %v222
        %v225 = vadd.f32 %v217, %v222
        %v226 = vadd.f32 %v218, %v222
        %v227 = vadd.f32 %v219, %v222
        %228 = vst [vmem:[%s205] sm:$0xff] %v224
        %229 = vst [vmem:[%s205 + $0x8] sm:$0xff] %v225
        %230 = vst [vmem:[%s205 + $0x10] sm:$0xff] %v226
        %231 = vst [vmem:[%s205 + $0x18] sm:$0xff] %v227
        %s232 = sand.u32 %s97, 1
        %s233 = scalar_lea.sflag [#allocation4], %s232
        %s234 = sand.u32 %s97, 1
        %s235 = smul.addr %s234, 32
        %s236 = scalar_lea.vmem [#allocation7], %s235
        // Predicated region
        $region41: #{tpu_custom_call.1} parent=31 // pred_check
          %p237 = pneg %p107
        $region42: #{tpu_custom_call.1} parent=31 // pred_check_branch
          %239 = sbr.rel (%p237) target = $region44
        $region43: #{tpu_custom_call.1} parent=31 // pred_region
          %s240 = smul.u32 4, %s21
          %242 = vsyncadd %s233, 0
          %s243 = smul.addr %s240, 8
          %s244 = scalar_lea.hbm %s3, %s243
          %s245 = sshll.u32 %s236, 4
          %s246 = int_to_ptr.vmem [resolvable:$true] %s245
          %s247 = sshll.u32 %s244, 4
          %s248 = int_to_ptr.hbm [resolvable:$true] %s247
          %253 = dma.vmem_to_hbm [thread:$0]  %s246, 512, %s248, %s233, 128, 128, 8
        $region44: #{tpu_custom_call.1} parent=31 // pred_fallthru
          _
      $region32: #{tpu_custom_call.1} parent=5 // pred_fallthru
        _
      %p254 = scmp.le.s32.totalorder 2, %s16
      // Predicated region
      $region45: #{tpu_custom_call.1} parent=5 // pred_check
        %p255 = pneg %p254
      $region46: #{tpu_custom_call.1} parent=5 // pred_check_branch
        %257 = sbr.rel (%p255) target = $region48
      $region47: #{tpu_custom_call.1} parent=5 // pred_region
        %s258 = ssub.s32 %s16, 2
        // Predicated region
        $region49: #{tpu_custom_call.1} parent=47 // pred_check
          %p259 = pneg %p113
        $region50: #{tpu_custom_call.1} parent=47 // pred_check_branch
          %261 = sbr.rel (%p259) target = $region52
        $region51: #{tpu_custom_call.1} parent=47 // pred_region
          %s262 = sand.u32 %s98, 1
          %s263 = scalar_lea.sflag [#allocation4], %s262
          %s264 = sand.u32 %s98, 1
          %s265 = smul.addr %s264, 32
          %s266 = scalar_lea.vmem [#allocation7], %s265
          %268 = dma.done %s263, 512
        $region52: #{tpu_custom_call.1} parent=47 // pred_fallthru
          _
      $region48: #{tpu_custom_call.1} parent=5 // pred_fallthru
        _
    $region6: #{tpu_custom_call.1} parent=1 // loop_footer
      %s20 = sadd.s32 1, %s16
    $region7: #{tpu_custom_call.1} parent=1 // loop_footer_branch
      %15 = sbr.rel target = $region3
    $region8: #{tpu_custom_call.1} parent=1 // loop_exit
      _
    %269 = vsyncpa [#allocation3], 1
    %s270 = scalar_lea.sflag [#allocation3], 1
    %271 = vsyncpa %s270, 1
    %272 = vsyncpa [#allocation6], 1
    %273 = vsyncpa [#allocation4], 1
    %s274 = scalar_lea.sflag [#allocation4], 1
    %275 = vsyncpa %s274, 1

</llo_original>
